<compile_context>
chip_gen: v6e
topology: v6e:2x2x1
jax: 0.10.0
libtpu: 0.0.40
codegen_flags: <defaults>
</compile_context>

<pallas_src>
import functools

import jax
import jax.numpy as jnp
from jax import lax
from jax.experimental import pallas as pl
from jax.experimental.pallas import tpu as pltpu

# Deterministic stand-in for cfg.getint('loss', 'pos_weight')
POS_WEIGHT = 3

LANE = 128      # TPU lane width
TM_MAX = 2048   # rows per grid step -> 1 MiB f32 block (plus narrow target)
NSPLIT = 2      # leading "parallel" grid axis (keeps both v7x cores busy)


def _round_up(x, m):
    return ((x + m - 1) // m) * m


def _hinge_kernel(out_ref, tgt_ref, part_ref, acc_ref, *,
                  pos_weight, total_rows, tm, mask_tail):
    c = pl.program_id(0)
    i = pl.program_id(1)
    nsteps = pl.num_programs(1)

    @pl.when(i == 0)
    def _():
        acc_ref[...] = jnp.zeros_like(acc_ref)

    # Cast in-kernel; inputs stream from HBM in their native (narrow) dtypes.
    o = out_ref[...].astype(jnp.float32)
    t = tgt_ref[...].astype(jnp.float32)

    # Single fused coefficient: -pos_weight where t > 0, +1 where t < 0, else 0.
    coef = jnp.where(
        t > 0.0,
        jnp.float32(-pos_weight),
        jnp.where(t < 0.0, jnp.float32(1.0), jnp.float32(0.0)),
    )
    contrib = o * coef

    if mask_tail:
        # Ragged tail: mask rows past the real row count (garbage data in the
        # over-hanging part of the last block is selected away before summing).
        row = ((c * nsteps + i) * tm
               + lax.broadcasted_iota(jnp.int32, (tm, LANE), 0))
        contrib = jnp.where(row < total_rows, contrib, 0.0)

    # (tm, 128) -> (8, 128): cross-vreg VPU adds only.  No per-step cross-lane
    # reduction and no serial SMEM read-modify-write in the inner loop.
    acc_ref[...] += contrib.reshape(tm // 8, 8, LANE).sum(axis=0)

    @pl.when(i == nsteps - 1)
    def _():
        part_ref[0, 0] = jnp.sum(acc_ref[...])


def hinge_loss(output, target, pos_weight=POS_WEIGHT):
    """Pallas implementation of HingeLoss.forward. Returns a float32 scalar."""
    o = output.reshape(-1)
    t = target.reshape(-1)
    n = o.shape[0]

    # Reshaping to a lane-dense (rows, 128) slab requires n % 128 == 0.  For
    # typical (N, C, H, W) score maps this already holds (no copy); only
    # otherwise do we pay for a small zero pad (target == 0 => excluded).
    rem = n % LANE
    if rem:
        pad = LANE - rem
        o = jnp.pad(o, (0, pad))
        t = jnp.pad(t, (0, pad))
    rows = o.shape[0] // LANE
    o2 = o.reshape(rows, LANE)
    t2 = t.reshape(rows, LANE)

    if rows >= TM_MAX:
        tm = TM_MAX
    else:
        tm = _round_up(rows, 8)          # keep the (8, 128) block-shape rule

    total_steps = pl.cdiv(rows, tm)
    mask_tail = (rows % tm) != 0

    # 2-way split of the row stream (used by v7x's two TensorCores); only when
    # the step count divides evenly so every block index stays in bounds.
    nsplit = NSPLIT if (total_steps % NSPLIT == 0 and total_steps >= NSPLIT) else 1
    steps = total_steps // nsplit

    kernel = functools.partial(
        _hinge_kernel,
        pos_weight=float(pos_weight),
        total_rows=rows,
        tm=tm,
        mask_tail=mask_tail,
    )

    def in_map(c, i):
        return (c * steps + i, 0)

    partials = pl.pallas_call(
        kernel,
        out_shape=jax.ShapeDtypeStruct((nsplit, 1), jnp.float32),
        grid_spec=pltpu.PrefetchScalarGridSpec(
            num_scalar_prefetch=0,
            grid=(nsplit, steps),
            in_specs=[
                pl.BlockSpec((tm, LANE), in_map),
                pl.BlockSpec((tm, LANE), in_map),
            ],
            out_specs=pl.BlockSpec((1, 1), lambda c, i: (c, 0),
                                   memory_space=pltpu.SMEM),
            scratch_shapes=[pltpu.VMEM((8, LANE), jnp.float32)],
        ),
        compiler_params=pltpu.CompilerParams(
            dimension_semantics=("parallel", "arbitrary"),
        ),
    )(o2, t2)

    return jnp.sum(partials)


def _reference(output, target, pos_weight):
    o_f = output.reshape(-1).astype(jnp.float32)
    t_f = target.reshape(-1).astype(jnp.float32)
    return (-pos_weight * jnp.sum(jnp.where(t_f > 0, o_f, 0.0))
            + jnp.sum(jnp.where(t_f < 0, o_f, 0.0)))


if __name__ == "__main__":
    key = jax.random.PRNGKey(0)
    k1, k2, k3, k4 = jax.random.split(key, 4)

    # Small (N, C, H, W) score map with int8 targets in {-1, 0, +1}.
    shape = (2, 4, 16, 16)
    output = jax.random.normal(k1, shape, dtype=jnp.float32)
    target = jax.random.randint(k2, shape, -1, 2).astype(jnp.int8)

    loss = jax.block_until_ready(hinge_loss(output, target, POS_WEIGHT))
    ref = _reference(output, target, POS_WEIGHT)
    assert jnp.allclose(loss, ref, rtol=1e-4, atol=1e-3), (loss, ref)

    # Larger case exercising the multi-step pipeline and the 2-way parallel
    # split (rows = 8192 -> 4 blocks of 2048, grid (2, 2)).
    shape2 = (8, 8, 128, 128)
    output2 = jax.random.normal(k3, shape2, dtype=jnp.float32)
    target2 = jax.random.randint(k4, shape2, -1, 2).astype(jnp.int8)

    loss2 = jax.block_until_ready(hinge_loss(output2, target2, POS_WEIGHT))
    ref2 = _reference(output2, target2, POS_WEIGHT)
    scale = POS_WEIGHT * jnp.sum(jnp.abs(output2)) + 1.0
    assert jnp.abs(loss2 - ref2) <= 1e-5 * scale, (loss2, ref2)

    print("KERNEL_OK")
</pallas_src>

<mosaic_0001>
module attributes {stable_mosaic.version = 11 : i64} {
  func.func @_hinge_kernel(%arg0: i32, %arg1: i32, %arg2: memref<16x128xf32, #tpu.memory_space<vmem>>, %arg3: memref<16x128xi8, #tpu.memory_space<vmem>>, %arg4: memref<1x1xf32, #tpu.memory_space<smem>>, %arg5: memref<8x128xf32, #tpu.memory_space<vmem>>) attributes {dimension_semantics = [#tpu.dimension_semantics<parallel>, #tpu.dimension_semantics<arbitrary>], iteration_bounds = array<i64: 1, 1>, scalar_prefetch = 0 : i64, scratch_operands = 1 : i64, tpu.core_type = #tpu.core_type<tc>, window_params = [{transform_indices = @transform_0, window_bounds = array<i64: 16, 128>}, {transform_indices = @transform_1, window_bounds = array<i64: 16, 128>}, {transform_indices = @transform_2, window_bounds = array<i64: 1, 1>}]} {
    %c0_i32 = arith.constant 0 : i32
    %0 = arith.cmpi eq, %arg1, %c0_i32 : i32
    %1 = arith.extui %0 : i1 to i32
    %c0_i32_0 = arith.constant 0 : i32
    %2 = arith.cmpi ne, %1, %c0_i32_0 : i32
    scf.if %2 {
      %cst_15 = arith.constant 0.000000e+00 : f32
      %24 = vector.broadcast %cst_15 : f32 to vector<8x128xf32>
      %c0_16 = arith.constant 0 : index
      %c0_17 = arith.constant 0 : index
      %25 = vector.load %arg5[%c0_16, %c0_17] : memref<8x128xf32, #tpu.memory_space<vmem>>, vector<8x128xf32>
      tpu.vector_store %arg5[%c0_16, %c0_17], %24 {strides = array<i32>} : memref<8x128xf32, #tpu.memory_space<vmem>>, vector<8x128xf32>,
    } else {
    }
    %c0 = arith.constant 0 : index
    %c0_1 = arith.constant 0 : index
    %3 = vector.load %arg2[%c0, %c0_1] : memref<16x128xf32, #tpu.memory_space<vmem>>, vector<16x128xf32>
    %c0_2 = arith.constant 0 : index
    %c0_3 = arith.constant 0 : index
    %4 = vector.load %arg3[%c0_2, %c0_3] : memref<16x128xi8, #tpu.memory_space<vmem>>, vector<16x128xi8>
    %5 = arith.sitofp %4 : vector<16x128xi8> to vector<16x128xf32>
    %cst = arith.constant 0.000000e+00 : f32
    %6 = vector.broadcast %cst : f32 to vector<16x128xf32>
    %7 = arith.cmpf ogt, %5, %6 : vector<16x128xf32>
    %cst_4 = arith.constant 0.000000e+00 : f32
    %8 = vector.broadcast %cst_4 : f32 to vector<16x128xf32>
    %9 = arith.cmpf olt, %5, %8 : vector<16x128xf32>
    %cst_5 = arith.constant 1.000000e+00 : f32
    %cst_6 = arith.constant 0.000000e+00 : f32
    %10 = vector.broadcast %cst_5 : f32 to vector<16x128xf32>
    %11 = vector.broadcast %cst_6 : f32 to vector<16x128xf32>
    %12 = arith.select %9, %10, %11 : vector<16x128xi1>, vector<16x128xf32>
    %cst_7 = arith.constant -3.000000e+00 : f32
    %13 = vector.broadcast %cst_7 : f32 to vector<16x128xf32>
    %14 = arith.select %7, %13, %12 : vector<16x128xi1>, vector<16x128xf32>
    %15 = arith.mulf %3, %14 : vector<16x128xf32>
    %c0_8 = arith.constant 0 : index
    %c0_9 = arith.constant 0 : index
    %16 = vector.load %arg5[%c0_8, %c0_9] : memref<8x128xf32, #tpu.memory_space<vmem>>, vector<8x128xf32>
    %17 = vector.shape_cast %15 : vector<16x128xf32> to vector<2x8x128xf32>
    %cst_10 = arith.constant dense<0.000000e+00> : vector<8x128xf32>
    %18 = vector.multi_reduction <add>, %17, %cst_10 [0] : vector<2x8x128xf32> to vector<8x128xf32>
    %19 = arith.addf %16, %18 : vector<8x128xf32>
    %c0_11 = arith.constant 0 : index
    %c0_12 = arith.constant 0 : index
    %20 = vector.load %arg5[%c0_11, %c0_12] : memref<8x128xf32, #tpu.memory_space<vmem>>, vector<8x128xf32>
    tpu.vector_store %arg5[%c0_11, %c0_12], %19 {strides = array<i32>} : memref<8x128xf32, #tpu.memory_space<vmem>>, vector<8x128xf32>,
    %c0_i32_13 = arith.constant 0 : i32
    %21 = arith.cmpi eq, %arg1, %c0_i32_13 : i32
    %22 = arith.extui %21 : i1 to i32
    %c0_i32_14 = arith.constant 0 : i32
    %23 = arith.cmpi ne, %22, %c0_i32_14 : i32
    scf.if %23 {
      %c0_15 = arith.constant 0 : index
      %c0_16 = arith.constant 0 : index
      %24 = vector.load %arg5[%c0_15, %c0_16] : memref<8x128xf32, #tpu.memory_space<vmem>>, vector<8x128xf32>
      %25 = vector.shape_cast %24 : vector<8x128xf32> to vector<1x8x128xf32>
      %cst_17 = arith.constant dense<0.000000e+00> : vector<1xf32>
      %26 = vector.multi_reduction <add>, %25, %cst_17 [1, 2] : vector<1x8x128xf32> to vector<1xf32>
      %27 = vector.shape_cast %26 : vector<1xf32> to vector<1x1x1xf32>
      %28 = vector.extract %27[0, 0, 0] : f32 from vector<1x1x1xf32>
      %c0_18 = arith.constant 0 : index
      %c0_19 = arith.constant 0 : index
      %29 = memref.load %arg4[%c0_18, %c0_19] : memref<1x1xf32, #tpu.memory_space<smem>>
      memref.store %28, %arg4[%c0_18, %c0_19] : memref<1x1xf32, #tpu.memory_space<smem>>
    } else {
    }
    return
  }
  func.func @transform_0(%arg0: i32, %arg1: i32) -> (i32, i32) {
    %c1_i32 = arith.constant 1 : i32
    %0 = arith.muli %arg0, %c1_i32 : i32
    %1 = arith.addi %0, %arg1 : i32
    %c0_i32 = arith.constant 0 : i32
    %c0_i32_0 = arith.constant 0 : i32
    return %1, %c0_i32 : i32, i32
  }
  func.func @transform_1(%arg0: i32, %arg1: i32) -> (i32, i32) {
    %c1_i32 = arith.constant 1 : i32
    %0 = arith.muli %arg0, %c1_i32 : i32
    %1 = arith.addi %0, %arg1 : i32
    %c0_i32 = arith.constant 0 : i32
    %c0_i32_0 = arith.constant 0 : i32
    return %1, %c0_i32 : i32, i32
  }
  func.func @transform_2(%arg0: i32, %arg1: i32) -> (i32, i32) {
    %c0_i32 = arith.constant 0 : i32
    %c0_i32_0 = arith.constant 0 : i32
    return %arg0, %c0_i32 : i32, i32
  }
}

</mosaic_0001>

<llo_original>
// kernel: tpu_custom_call.1
$region0: #{tpu_custom_call.1}
  #allocation0 [shape = 'u32[]', space=smem, size = 0x4, offset = 0x4, fixed_abs, tag = 'smem constant byte address 0x4 - core index']
  #allocation1 [shape = 'u32[144,128]{1,0:T(1,128)}', space=vmem, size = 0x12000, scoped, tag = 'internal scratch']
  #allocation2 [shape = 'f32[8,128]{1,0:T(8,128)}', space=vmem, size = 0x1000, scoped, tag = 'scratch operand']
  %s0 = inlined_call_operand.hbm [shape: f32[16,128], index: 0, kind: input, shape index: {}]
  %s1 = inlined_call_operand.hbm [shape: s8[16,128], index: 1, kind: input, shape index: {}]
  %s2 = inlined_call_operand.hbm [shape: f32[1,1], index: 2, kind: output, shape index: {}]
  %s3 = sld [smem:[#allocation0]]
  $region34: #{tpu_custom_call.1} parent=0
    _
  %s5 = ssub.s32 1, %s3
  %s6 = scalar_select 0, %s5, %s3
  $region1: #{tpu_custom_call.1} parent=0
    #allocation3 [shape = 'u8[8192]{0}', space=vmem, size = 0x2000, scoped, tag = 'input window, operand 0, single buffered']
    #allocation4 [shape = 's32[1]{0}', space=sflag, size = 0x4, scoped, tag = 'scoped memory for tpu_custom_call.1']
    #allocation5 [shape = 's32[1]{0}', space=sflag, size = 0x4, scoped, tag = 'scoped memory for tpu_custom_call.1']
    #allocation6 [shape = 'u8[2048]{0}', space=vmem, size = 0x800, scoped, tag = 'input window, operand 1, single buffered']
    #allocation7 [shape = 's32[1]{0}', space=sflag, size = 0x4, scoped, tag = 'scoped memory for tpu_custom_call.1']
    #allocation8 [shape = 'u8[512]{0}', space=smem, size = 0x200, scoped, tag = 'output window, operand 0, single buffered']
    %7 = vsyncpa [#allocation4], 0
    %8 = vsyncpa [#allocation7], 0
    %9 = vsyncpa [#allocation5], 0
    // Predicated region
    $region2: #{tpu_custom_call.1} parent=1 // pred_check
      _
    $region3: #{tpu_custom_call.1} parent=1 // pred_check_branch
      %11 = sbr.rel (0) target = $region5
    $region4: #{tpu_custom_call.1} parent=1 // pred_region
      %s12 = sadd.s32 0, 0
      %s13 = smul.u32 2, %s12
      %s15 = ssub.s32 256, 256
      %16 = vsyncadd [#allocation4], %s15
      %s17 = smul.addr %s13, 128
      %s18 = scalar_lea.hbm %s0, %s17
      %s19 = sshll.u32 [#allocation3], 4
      %s20 = int_to_ptr.vmem [resolvable:$true] %s19
      %25 = dma.hbm_to_vmem [thread:$0]  %s18, 256, %s20, [#allocation4], 128, 128, 8
    $region5: #{tpu_custom_call.1} parent=1 // pred_fallthru
      _
    // Predicated region
    $region6: #{tpu_custom_call.1} parent=1 // pred_check
      _
    $region7: #{tpu_custom_call.1} parent=1 // pred_check_branch
      %27 = sbr.rel (0) target = $region9
    $region8: #{tpu_custom_call.1} parent=1 // pred_region
      %s28 = sadd.s32 0, 0
      %s29 = smul.u32 2, %s28
      %s31 = ssub.s32 64, 64
      %32 = vsyncadd [#allocation7], %s31
      %s33 = smul.addr %s29, 32
      %s34 = scalar_lea.hbm %s1, %s33
      %s35 = sshll.u32 [#allocation6], 4
      %s36 = int_to_ptr.vmem [resolvable:$true] %s35
      %41 = dma.hbm_to_vmem [thread:$0]  %s34, 64, %s36, [#allocation7], 32, 32, 2
    $region9: #{tpu_custom_call.1} parent=1 // pred_fallthru
      _
    // Predicated region
    $region10: #{tpu_custom_call.1} parent=1 // pred_check
      _
    $region11: #{tpu_custom_call.1} parent=1 // pred_check_branch
      %43 = sbr.rel (0) target = $region13
    $region12: #{tpu_custom_call.1} parent=1 // pred_region
      %44 = dma.done [#allocation4], 256
    $region13: #{tpu_custom_call.1} parent=1 // pred_fallthru
      _
    // Predicated region
    $region14: #{tpu_custom_call.1} parent=1 // pred_check
      _
    $region15: #{tpu_custom_call.1} parent=1 // pred_check_branch
      %46 = sbr.rel (0) target = $region17
    $region16: #{tpu_custom_call.1} parent=1 // pred_region
      %47 = dma.done [#allocation7], 64
    $region17: #{tpu_custom_call.1} parent=1 // pred_fallthru
      _
    %s48 = sadd.s32 0, 0
    %s49 = smul.u32 2, %s48
    %s50 = sadd.s32 0, 0
    %s51 = smul.u32 2, %s50
    %p52 = scmp.eq.s32.totalorder 0, 0
    // Predicated region
    $region18: #{tpu_custom_call.1} parent=1 // pred_check
      %p53 = pneg %p52
    $region19: #{tpu_custom_call.1} parent=1 // pred_check_branch
      %55 = sbr.rel (%p53) target = $region21
    $region20: #{tpu_custom_call.1} parent=1 // pred_region
      %56 = vst [vmem:[#allocation2] sm:$0xff] 0.0
    $region21: #{tpu_custom_call.1} parent=1 // pred_fallthru
      _
    %v57 = vld [vmem:[#allocation3] sm:$0xff]
    %v58 = vld [vmem:[#allocation3 + $0x8] sm:$0xff]
    %v59 = vld [vmem:[#allocation6] sm:$0x3]
    %v60 = vld [vmem:[#allocation6 + $0x2] sm:$0x3]
    %v61 = vunpack.c.0.s8 %v59
    %v62 = vunpack.c.0.s8 %v60
    %v63 = vcvt.s32.f32 %v61
    %v64 = vcvt.s32.f32 %v62
    %vm65 = vcmp.gt.f32.partialorder %v63, 0.0
    %vm66 = vcmp.gt.f32.partialorder %v64, 0.0
    %vm67 = vcmp.lt.f32.partialorder %v63, 0.0
    %vm68 = vcmp.lt.f32.partialorder %v64, 0.0
    %v69 = vsel %vm67, 1.0, 0.0
    %v70 = vsel %vm68, 1.0, 0.0
    %v71 = vsel %vm65, -3.0, %v69
    %v72 = vsel %vm66, -3.0, %v70
    %v73 = vmul.f32 %v57, %v71
    %v74 = vmul.f32 %v58, %v72
    %v75 = vld [vmem:[#allocation2] sm:$0xff]
    %v76 = vadd.f32 %v73, %v74
    %v77 = vadd.f32 %v75, %v76
    %78 = vst [vmem:[#allocation2] sm:$0xff] %v77
    // Predicated region
    $region22: #{tpu_custom_call.1} parent=1 // pred_check
      %p79 = pneg %p52
    $region23: #{tpu_custom_call.1} parent=1 // pred_check_branch
      %81 = sbr.rel (%p79) target = $region25
    $region24: #{tpu_custom_call.1} parent=1 // pred_region
      %v82 = vld [vmem:[#allocation2] sm:$0xff]
      %83 = vadd.xlane.f32.xlu0 %v82
      %v84 = vpop.xlane.xlu0 %83
      %v85 = vrot.slane %v84, 4
      %v86 = vadd.f32 %v84, %v85
      %v87 = vrot.slane %v86, 2
      %v88 = vadd.f32 %v86, %v87
      %v89 = vrot.slane %v88, 1
      %v90 = vadd.f32 %v88, %v89
      %s91 = vtos %v90
      %s92 = scalar_lea.smem [#allocation8], 0
      %93 = sst [smem:[%s92]] %s91
    $region25: #{tpu_custom_call.1} parent=1 // pred_fallthru
      _
    // Predicated region
    $region26: #{tpu_custom_call.1} parent=1 // pred_check
      _
    $region27: #{tpu_custom_call.1} parent=1 // pred_check_branch
      %95 = sbr.rel (0) target = $region29
    $region28: #{tpu_custom_call.1} parent=1 // pred_region
      %s97 = ssub.s32 16, 16
      %98 = vsyncadd [#allocation5], %s97
      %101 = dma.smem_to_hbm [#allocation8], 16, %s2, [#allocation5]
    $region29: #{tpu_custom_call.1} parent=1 // pred_fallthru
      _
    // Predicated region
    $region30: #{tpu_custom_call.1} parent=1 // pred_check
      _
    $region31: #{tpu_custom_call.1} parent=1 // pred_check_branch
      %103 = sbr.rel (0) target = $region33
    $region32: #{tpu_custom_call.1} parent=1 // pred_region
      %104 = dma.done [#allocation5], 16
    $region33: #{tpu_custom_call.1} parent=1 // pred_fallthru
      _
    %105 = sfence
    %106 = vsyncpa [#allocation4], 1
    %107 = vsyncpa [#allocation7], 1
    %108 = vsyncpa [#allocation5], 1

</llo_original>
